<compile_context>
chip_gen: v6e
topology: v6e:2x2x1
jax: 0.10.0
libtpu: 0.0.40
codegen_flags: <defaults>
</compile_context>

<pallas_src>
from functools import partial

import jax
import jax.numpy as jnp
from jax.experimental import pallas as pl
from jax.experimental.pallas import tpu as pltpu


def mlp_kernel(xT_ref, wb12_ref, wb3_ref, o_ref):
    # Static sizes from the (static) ref shapes.
    hidden = wb12_ref.shape[0]
    in_features = xT_ref.shape[0]

    xT = xT_ref[...]                                        # (in_features, TB), batch on lanes

    # Unpack the two weight slabs with static (zero-cost) slices.
    w2 = wb12_ref[:, 0:hidden]                              # (H, H)   lane-aligned for the MXU
    w1 = wb12_ref[:, hidden:hidden + in_features]           # (H, in)
    b1 = wb12_ref[:, hidden + in_features:hidden + in_features + 1]      # (H, 1)
    b2 = wb12_ref[:, hidden + in_features + 1:hidden + in_features + 2]  # (H, 1)
    w3 = wb3_ref[:, 0:hidden]                               # (out, H)
    b3 = wb3_ref[:, hidden:hidden + 1]                      # (out, 1)

    # Layer 1: contraction depth == in_features (tiny) -> VPU FMAs, skip the MXU.
    # Bias folded into the accumulator init.
    acc = b1 + w1[:, 0:1] * xT[0:1, :]                      # (H, TB)
    for k in range(1, in_features):                         # static, unrolled
        acc = acc + w1[:, k:k + 1] * xT[k:k + 1, :]
    h1 = jnp.maximum(acc, 0.0)                              # (H, TB)

    # Layer 2: (H, H) @ (H, TB) on the MXU, exact-f32 accumulation.
    h2 = jnp.dot(w2, h1, preferred_element_type=jnp.float32,
                 precision=jax.lax.Precision.HIGHEST)
    h2 = jnp.maximum(h2 + b2, 0.0)                          # (H, TB)

    # Layer 3: (out, H) @ (H, TB); result is lane-dense along the batch axis.
    y = jnp.dot(w3, h2, preferred_element_type=jnp.float32,
                precision=jax.lax.Precision.HIGHEST)
    o_ref[...] = (y + b3).astype(o_ref.dtype)               # (out, TB)


def _select_batch_tile(batch, requested=None):
    """Lane-axis batch tile: multiple of 128, capped at 512 (vreg pressure, not VMEM,
    is the ceiling).  On v7x keep >=2 grid steps so the parallel axis uses both TCs."""
    if requested is not None:
        return max(128, (requested // 128) * 128)
    n_tc = 1
    try:
        if "v7" in jax.devices()[0].device_kind.lower():
            n_tc = 2
    except Exception:  # pragma: no cover - be robust to odd backends
        pass
    tb = pl.cdiv(batch, n_tc)                    # fewest steps that still feed every TC
    tb = ((tb + 127) // 128) * 128               # round up to a lane multiple
    return min(512, max(128, tb))


@partial(jax.jit, static_argnames=("batch_tile",))
def _moon_forward_impl(x, w1, b1, w2, b2, w3, b3, *, batch_tile):
    B, in_features = x.shape
    hidden = w1.shape[0]
    out_features = w3.shape[0]

    tb = batch_tile
    n_blocks = pl.cdiv(B, tb)

    # Pack weights/biases into two lane-contiguous slabs (2 startup DMAs instead of 7).
    # w2 first so the big MXU operand starts at lane 0.
    wb12 = jnp.concatenate(
        [w2, w1, b1.reshape(hidden, 1), b2.reshape(hidden, 1)], axis=1)   # (H, H+in+2)
    wb3 = jnp.concatenate([w3, b3.reshape(out_features, 1)], axis=1)      # (out, H+1)

    # Batch-on-lanes input.  No materialized pad: Pallas partial-tile handling covers
    # a ragged last block (pad lanes never contaminate valid lanes -- no lane reduce).
    xT = x.T                                                              # (in, B)

    const = lambda i: (0, 0)   # weights/biases: single DMA, VMEM-resident across steps

    yT = pl.pallas_call(
        mlp_kernel,
        out_shape=jax.ShapeDtypeStruct((out_features, B), jnp.float32),
        grid=(n_blocks,),
        in_specs=[
            pl.BlockSpec((in_features, tb), lambda i: (0, i)),   # x^T batch tile
            pl.BlockSpec(wb12.shape, const),
            pl.BlockSpec(wb3.shape, const),
        ],
        out_specs=pl.BlockSpec((out_features, tb), lambda i: (0, i)),
        compiler_params=pltpu.CompilerParams(
            dimension_semantics=("parallel",)),   # v7x: shard batch over both TCs
    )(xT, wb12, wb3)

    if out_features == 1:
        return yT.reshape(B, 1)        # pure reshape, no transpose
    return yT.T


def moon_model_forward(x, params, *, batch_tile=None):
    """x: (B, in_features) float32. params in PyTorch nn.Linear layout:
       w*: (out, in), b*: (out,).  Returns (B, out_features) float32."""
    tb = _select_batch_tile(x.shape[0], batch_tile)
    return _moon_forward_impl(x, params["w1"], params["b1"], params["w2"],
                              params["b2"], params["w3"], params["b3"],
                              batch_tile=tb)


def init_params(key, in_features, out_features, hidden_units):
    """Deterministic init mimicking nn.Linear's U(-1/sqrt(fan_in), 1/sqrt(fan_in)),
    stored in PyTorch layout: w (out, in), b (out,)."""
    ks = jax.random.split(key, 6)

    def linear(kw, kb, fan_in, fan_out):
        bound = 1.0 / jnp.sqrt(jnp.float32(fan_in))
        w = jax.random.uniform(kw, (fan_out, fan_in), jnp.float32, -bound, bound)
        b = jax.random.uniform(kb, (fan_out,), jnp.float32, -bound, bound)
        return w, b

    w1, b1 = linear(ks[0], ks[1], in_features, hidden_units)
    w2, b2 = linear(ks[2], ks[3], hidden_units, hidden_units)
    w3, b3 = linear(ks[4], ks[5], hidden_units, out_features)
    return dict(w1=w1, b1=b1, w2=w2, b2=b2, w3=w3, b3=b3)


def reference_forward(x, p):
    h1 = jnp.maximum(x @ p["w1"].T + p["b1"], 0.0)
    h2 = jnp.maximum(h1 @ p["w2"].T + p["b2"], 0.0)
    return h2 @ p["w3"].T + p["b3"]


if __name__ == "__main__":
    # MoonModelV0(in_features=2, out_features=1, hidden_units=32), batch=256.
    in_features, out_features, hidden_units, batch = 2, 1, 32, 256

    key = jax.random.PRNGKey(0)
    kx, kp = jax.random.split(key)
    x = jax.random.normal(kx, (batch, in_features), jnp.float32)
    params = init_params(kp, in_features, out_features, hidden_units)

    # Auto-selected tile (v5e/v6e: 1x256-wide step; v7x: 2x128-wide steps on 2 TCs).
    out = moon_model_forward(x, params)
    out = jax.block_until_ready(out)

    ref = reference_forward(x, params)
    assert out.shape == (batch, out_features)
    assert jnp.allclose(out, ref, atol=1e-5, rtol=1e-5), "mismatch vs reference"

    # Also exercise the multi-block grid + ragged last tile path explicitly.
    out2 = jax.block_until_ready(moon_model_forward(x[:200], params, batch_tile=128))
    assert jnp.allclose(out2, ref[:200], atol=1e-5, rtol=1e-5), "ragged-tile mismatch"

    print("KERNEL_OK")
</pallas_src>

<mosaic_0001>
module attributes {stable_mosaic.version = 11 : i64} {
  func.func @mlp_kernel(%arg0: i32, %arg1: memref<2x256xf32, #tpu.memory_space<vmem>>, %arg2: memref<32x36xf32, #tpu.memory_space<vmem>>, %arg3: memref<1x33xf32, #tpu.memory_space<vmem>>, %arg4: memref<1x256xf32, #tpu.memory_space<vmem>>) attributes {dimension_semantics = [#tpu.dimension_semantics<parallel>], iteration_bounds = array<i64: 1>, scalar_prefetch = 0 : i64, scratch_operands = 0 : i64, tpu.core_type = #tpu.core_type<tc>, window_params = [{transform_indices = @transform_0, window_bounds = array<i64: 2, 256>}, {pipeline_mode = #tpu.pipeline_mode<synchronous>, transform_indices = @transform_1, window_bounds = array<i64: 32, 36>}, {pipeline_mode = #tpu.pipeline_mode<synchronous>, transform_indices = @transform_2, window_bounds = array<i64: 1, 33>}, {transform_indices = @transform_3, window_bounds = array<i64: 1, 256>}]} {
    %c0 = arith.constant 0 : index
    %c0_0 = arith.constant 0 : index
    %0 = vector.load %arg1[%c0, %c0_0] : memref<2x256xf32, #tpu.memory_space<vmem>>, vector<2x256xf32>
    %c0_1 = arith.constant 0 : index
    %c0_2 = arith.constant 0 : index
    %1 = vector.load %arg2[%c0_1, %c0_2] : memref<32x36xf32, #tpu.memory_space<vmem>>, vector<32x32xf32>
    %c0_3 = arith.constant 0 : index
    %c32 = arith.constant 32 : index
    %2 = vector.load %arg2[%c0_3, %c32] : memref<32x36xf32, #tpu.memory_space<vmem>>, vector<32x2xf32>
    %c0_4 = arith.constant 0 : index
    %c34 = arith.constant 34 : index
    %3 = vector.load %arg2[%c0_4, %c34] : memref<32x36xf32, #tpu.memory_space<vmem>>, vector<32x1xf32>
    %c0_5 = arith.constant 0 : index
    %c35 = arith.constant 35 : index
    %4 = vector.load %arg2[%c0_5, %c35] : memref<32x36xf32, #tpu.memory_space<vmem>>, vector<32x1xf32>
    %c0_6 = arith.constant 0 : index
    %c0_7 = arith.constant 0 : index
    %5 = vector.load %arg3[%c0_6, %c0_7] : memref<1x33xf32, #tpu.memory_space<vmem>>, vector<1x32xf32>
    %c0_8 = arith.constant 0 : index
    %c32_9 = arith.constant 32 : index
    %6 = vector.load %arg3[%c0_8, %c32_9] : memref<1x33xf32, #tpu.memory_space<vmem>>, vector<1x1xf32>
    %7 = vector.extract_strided_slice %2 {offsets = [0, 0], sizes = [32, 1], strides = [1, 1]} : vector<32x2xf32> to vector<32x1xf32>
    %8 = vector.extract_strided_slice %0 {offsets = [0, 0], sizes = [1, 256], strides = [1, 1]} : vector<2x256xf32> to vector<1x256xf32>
    %9 = vector.broadcast %7 : vector<32x1xf32> to vector<32x256xf32>
    %10 = vector.broadcast %8 : vector<1x256xf32> to vector<32x256xf32>
    %11 = arith.mulf %9, %10 : vector<32x256xf32>
    %12 = vector.broadcast %3 : vector<32x1xf32> to vector<32x256xf32>
    %13 = arith.addf %12, %11 : vector<32x256xf32>
    %14 = vector.extract_strided_slice %2 {offsets = [0, 1], sizes = [32, 1], strides = [1, 1]} : vector<32x2xf32> to vector<32x1xf32>
    %15 = vector.extract_strided_slice %0 {offsets = [1, 0], sizes = [1, 256], strides = [1, 1]} : vector<2x256xf32> to vector<1x256xf32>
    %16 = vector.broadcast %14 : vector<32x1xf32> to vector<32x256xf32>
    %17 = vector.broadcast %15 : vector<1x256xf32> to vector<32x256xf32>
    %18 = arith.mulf %16, %17 : vector<32x256xf32>
    %19 = arith.addf %13, %18 : vector<32x256xf32>
    %cst = arith.constant 0.000000e+00 : f32
    %20 = vector.broadcast %cst : f32 to vector<32x256xf32>
    %21 = arith.maximumf %19, %20 : vector<32x256xf32>
    %cst_10 = arith.constant dense<0.000000e+00> : vector<32x256xf32>
    %22 = tpu.matmul %1, %21, %cst_10 {dimension_numbers = #tpu.dot_dimension_numbers<[1], [0], [0], [1], [0, 0, 1, 1], [], []>, precision = #tpu.contract_precision<fp32>} : vector<32x32xf32>, vector<32x256xf32>, vector<32x256xf32> -> vector<32x256xf32>
    %23 = vector.broadcast %4 : vector<32x1xf32> to vector<32x256xf32>
    %24 = arith.addf %22, %23 : vector<32x256xf32>
    %cst_11 = arith.constant 0.000000e+00 : f32
    %25 = vector.broadcast %cst_11 : f32 to vector<32x256xf32>
    %26 = arith.maximumf %24, %25 : vector<32x256xf32>
    %cst_12 = arith.constant dense<0.000000e+00> : vector<1x256xf32>
    %27 = tpu.matmul %5, %26, %cst_12 {dimension_numbers = #tpu.dot_dimension_numbers<[1], [0], [0], [1], [0, 0, 1, 1], [], []>, precision = #tpu.contract_precision<fp32>} : vector<1x32xf32>, vector<32x256xf32>, vector<1x256xf32> -> vector<1x256xf32>
    %28 = vector.broadcast %6 : vector<1x1xf32> to vector<1x256xf32>
    %29 = arith.addf %27, %28 : vector<1x256xf32>
    %c0_13 = arith.constant 0 : index
    %c0_14 = arith.constant 0 : index
    %30 = vector.load %arg4[%c0_13, %c0_14] : memref<1x256xf32, #tpu.memory_space<vmem>>, vector<1x256xf32>
    tpu.vector_store %arg4[%c0_13, %c0_14], %29 {strides = array<i32>} : memref<1x256xf32, #tpu.memory_space<vmem>>, vector<1x256xf32>,
    return
  }
  func.func @transform_0(%arg0: i32) -> (i32, i32) {
    %c0_i32 = arith.constant 0 : i32
    %c0_i32_0 = arith.constant 0 : i32
    return %c0_i32, %arg0 : i32, i32
  }
  func.func @transform_1(%arg0: i32) -> (i32, i32) {
    %c0_i32 = arith.constant 0 : i32
    %c0_i32_0 = arith.constant 0 : i32
    %c0_i32_1 = arith.constant 0 : i32
    return %c0_i32, %c0_i32_0 : i32, i32
  }
  func.func @transform_2(%arg0: i32) -> (i32, i32) {
    %c0_i32 = arith.constant 0 : i32
    %c0_i32_0 = arith.constant 0 : i32
    %c0_i32_1 = arith.constant 0 : i32
    return %c0_i32, %c0_i32_0 : i32, i32
  }
  func.func @transform_3(%arg0: i32) -> (i32, i32) {
    %c0_i32 = arith.constant 0 : i32
    %c0_i32_0 = arith.constant 0 : i32
    return %c0_i32, %arg0 : i32, i32
  }
}

</mosaic_0001>

<llo_original>
// kernel: _moon_forward_impl.1
$region0: #{_moon_forward_impl.1}
  #allocation0 [shape = 'u32[]', space=smem, size = 0x4, offset = 0x4, fixed_abs, tag = 'smem constant byte address 0x4 - core index']
  #allocation1 [shape = 'u32[144,128]{1,0:T(1,128)}', space=vmem, size = 0x12000, scoped, tag = 'internal scratch']
  %s0 = inlined_call_operand.vmem [shape: f32[2,256], index: 0, kind: input, shape index: {}]
  %s1 = inlined_call_operand.vmem [shape: f32[32,36], index: 1, kind: input, shape index: {}]
  %s2 = inlined_call_operand.vmem [shape: f32[1,33], index: 2, kind: input, shape index: {}]
  %s3 = inlined_call_operand.hbm [shape: f32[1,256], index: 3, kind: output, shape index: {}]
  %s4 = sld [smem:[#allocation0]]
  $region22: #{_moon_forward_impl.1} parent=0
    _
  %s6 = ssub.s32 1, %s4
  %s7 = scalar_select 0, %s6, %s4
  $region1: #{_moon_forward_impl.1} parent=0
    #allocation2 [shape = 'u8[1024]{0}', space=vmem, size = 0x400, scoped, tag = 'output window, operand 0, single buffered']
    #allocation3 [shape = 's32[1]{0}', space=sflag, size = 0x4, scoped, tag = 'scoped memory for _moon_forward_impl.1']
    %8 = vsyncpa [#allocation3], 0
    // Predicated region
    $region2: #{_moon_forward_impl.1} parent=1 // pred_check
      _
    $region3: #{_moon_forward_impl.1} parent=1 // pred_check_branch
      %10 = sbr.rel (0) target = $region5
    $region4: #{_moon_forward_impl.1} parent=1 // pred_region
      _
    $region5: #{_moon_forward_impl.1} parent=1 // pred_fallthru
      _
    // Predicated region
    $region6: #{_moon_forward_impl.1} parent=1 // pred_check
      _
    $region7: #{_moon_forward_impl.1} parent=1 // pred_check_branch
      %12 = sbr.rel (0) target = $region9
    $region8: #{_moon_forward_impl.1} parent=1 // pred_region
      _
    $region9: #{_moon_forward_impl.1} parent=1 // pred_fallthru
      _
    // Predicated region
    $region10: #{_moon_forward_impl.1} parent=1 // pred_check
      _
    $region11: #{_moon_forward_impl.1} parent=1 // pred_check_branch
      %14 = sbr.rel (0) target = $region13
    $region12: #{_moon_forward_impl.1} parent=1 // pred_region
      _
    $region13: #{_moon_forward_impl.1} parent=1 // pred_fallthru
      _
    %v15 = vld [vmem:[%s0] sm:$0xf]
    %v16 = vld [vmem:[%s1] sm:$0xff]
    %v17 = vld [vmem:[%s1 + $0x8] sm:$0xff]
    %v18 = vld [vmem:[%s1 + $0x10] sm:$0xff]
    %v19 = vld [vmem:[%s1 + $0x18] sm:$0xff]
    %v20 = vld [vmem:[%s2] sm:$0x1]
    %22 = vset.pattern.permute.xlu0 32
    %23 = vperm.xlu0 %22, %v16
    %v24 = vpop.permute.xlu0 %23
    %27 = vset.pattern.permute.xlu0 32
    %28 = vperm.xlu0 %27, %v17
    %v29 = vpop.permute.xlu0 %28
    %32 = vset.pattern.permute.xlu0 32
    %33 = vperm.xlu0 %32, %v18
    %v34 = vpop.permute.xlu0 %33
    %37 = vset.pattern.permute.xlu0 32
    %38 = vperm.xlu0 %37, %v19
    %v39 = vpop.permute.xlu0 %38
    %v42 = vlaneseq
    %v43 = vshrl.u32 %v42, 7
    %v44 = vsub.s32 0, %v43
    %v45 = vrot.slane %v15, %v44
    %v46 = vlaneseq
    %v47 = vshrl.u32 %v46, 7
    %v48 = vsub.s32 2, %v47
    %v49 = vrot.slane %v15, %v48
    %v52 = vlaneseq
    %v53 = vshrl.u32 %v52, 7
    %v54 = vsub.s32 0, %v53
    %v55 = vrot.slane %v45, %v54
    %v56 = vlaneseq
    %v57 = vshrl.u32 %v56, 7
    %v58 = vsub.s32 0, %v57
    %v59 = vrot.slane %v49, %v58
    %v60 = vmul.f32 %v24, %v55
    %v61 = vmul.f32 %v24, %v59
    %v62 = vmul.f32 %v29, %v55
    %v63 = vmul.f32 %v29, %v59
    %v64 = vmul.f32 %v34, %v55
    %v65 = vmul.f32 %v34, %v59
    %v66 = vmul.f32 %v39, %v55
    %v67 = vmul.f32 %v39, %v59
    %68 = vset.pattern.permute.xlu0 34
    %69 = vperm.xlu0 %68, %v16
    %v70 = vpop.permute.xlu0 %69
    %72 = vset.pattern.permute.xlu0 34
    %73 = vperm.xlu0 %72, %v17
    %v74 = vpop.permute.xlu0 %73
    %76 = vset.pattern.permute.xlu0 34
    %77 = vperm.xlu0 %76, %v18
    %v78 = vpop.permute.xlu0 %77
    %80 = vset.pattern.permute.xlu0 34
    %81 = vperm.xlu0 %80, %v19
    %v82 = vpop.permute.xlu0 %81
    %v84 = vadd.f32 %v70, %v60
    %v85 = vadd.f32 %v70, %v61
    %v86 = vadd.f32 %v74, %v62
    %v87 = vadd.f32 %v74, %v63
    %v88 = vadd.f32 %v78, %v64
    %v89 = vadd.f32 %v78, %v65
    %v90 = vadd.f32 %v82, %v66
    %v91 = vadd.f32 %v82, %v67
    %92 = vset.pattern.permute.xlu0 33
    %93 = vperm.xlu0 %92, %v16
    %v94 = vpop.permute.xlu0 %93
    %96 = vset.pattern.permute.xlu0 33
    %97 = vperm.xlu0 %96, %v17
    %v98 = vpop.permute.xlu0 %97
    %100 = vset.pattern.permute.xlu0 33
    %101 = vperm.xlu0 %100, %v18
    %v102 = vpop.permute.xlu0 %101
    %104 = vset.pattern.permute.xlu0 33
    %105 = vperm.xlu0 %104, %v19
    %v106 = vpop.permute.xlu0 %105
    %v108 = vlaneseq
    %v109 = vshrl.u32 %v108, 7
    %v110 = vsub.s32 1, %v109
    %v111 = vrot.slane %v15, %v110
    %v112 = vlaneseq
    %v113 = vshrl.u32 %v112, 7
    %v114 = vsub.s32 3, %v113
    %v115 = vrot.slane %v15, %v114
    %v118 = vlaneseq
    %v119 = vshrl.u32 %v118, 7
    %v120 = vsub.s32 1, %v119
    %v121 = vrot.slane %v111, %v120
    %v122 = vlaneseq
    %v123 = vshrl.u32 %v122, 7
    %v124 = vsub.s32 1, %v123
    %v125 = vrot.slane %v115, %v124
    %v126 = vmul.f32 %v94, %v121
    %v127 = vmul.f32 %v94, %v125
    %v128 = vmul.f32 %v98, %v121
    %v129 = vmul.f32 %v98, %v125
    %v130 = vmul.f32 %v102, %v121
    %v131 = vmul.f32 %v102, %v125
    %v132 = vmul.f32 %v106, %v121
    %v133 = vmul.f32 %v106, %v125
    %v134 = vadd.f32 %v84, %v126
    %v135 = vadd.f32 %v85, %v127
    %v136 = vadd.f32 %v86, %v128
    %v137 = vadd.f32 %v87, %v129
    %v138 = vadd.f32 %v88, %v130
    %v139 = vadd.f32 %v89, %v131
    %v140 = vadd.f32 %v90, %v132
    %v141 = vadd.f32 %v91, %v133
    %v142 = vmax.f32 %v134, 0.0
    %v143 = vmax.f32 %v135, 0.0
    %v144 = vmax.f32 %v136, 0.0
    %v145 = vmax.f32 %v137, 0.0
    %v146 = vmax.f32 %v138, 0.0
    %v147 = vmax.f32 %v139, 0.0
    %v148 = vmax.f32 %v140, 0.0
    %v149 = vmax.f32 %v141, 0.0
    %150 = vset.pattern.permute.xlu0 35
    %151 = vperm.xlu0 %150, %v16
    %v152 = vpop.permute.xlu0 %151
    %154 = vset.pattern.permute.xlu0 35
    %155 = vperm.xlu0 %154, %v17
    %v156 = vpop.permute.xlu0 %155
    %158 = vset.pattern.permute.xlu0 35
    %159 = vperm.xlu0 %158, %v18
    %v160 = vpop.permute.xlu0 %159
    %162 = vset.pattern.permute.xlu0 35
    %163 = vperm.xlu0 %162, %v19
    %v164 = vpop.permute.xlu0 %163
    %vm166 = vcmask 261120
    %v167 = vsel %vm166, %v16, 0
    %v169 = vsel %vm166, %v17, 0
    %v171 = vsel %vm166, %v18, 0
    %v173 = vsel %vm166, %v19, 0
    %175 = vmatprep.subr.mxu0 0.0
    %176 = vmatpush1.msra.mxu0 0.0
    %177 = vmatprep.subr.mxu0 0.0
    %178 = vmatpush1.msra.mxu0 0.0
    %179 = vmatprep.subr.mxu0 0.0
    %180 = vmatpush1.msra.mxu0 0.0
    %181 = vmatprep.subr.mxu0 0.0
    %182 = vmatpush1.msra.mxu0 0.0
    %183 = vmatprep.subr.mxu0 0.0
    %184 = vmatpush1.msra.mxu0 0.0
    %185 = vmatprep.subr.mxu0 0.0
    %186 = vmatpush1.msra.mxu0 0.0
    %187 = vmatprep.subr.mxu0 0.0
    %188 = vmatpush1.msra.mxu0 0.0
    %189 = vmatprep.subr.mxu0 0.0
    %190 = vmatpush1.msra.mxu0 0.0
    %191 = vmatprep.subr.mxu0 0.0
    %192 = vmatpush1.msra.mxu0 0.0
    %193 = vmatprep.subr.mxu0 0.0
    %194 = vmatpush1.msra.mxu0 0.0
    %195 = vmatprep.subr.mxu0 0.0
    %196 = vmatpush1.msra.mxu0 0.0
    %197 = vmatprep.subr.mxu0 0.0
    %198 = vmatpush1.msra.mxu0 0.0
    %v199 = vand.u32 %v149, 4294901760
    %200 = vmatprep.subr.mxu0 %v199
    %v201 = vand.u32 %v148, 4294901760
    %202 = vmatpush1.msra.mxu0 %v201
    %v203 = vand.u32 %v147, 4294901760
    %204 = vmatprep.subr.mxu0 %v203
    %v205 = vand.u32 %v146, 4294901760
    %206 = vmatpush1.msra.mxu0 %v205
    %v207 = vand.u32 %v145, 4294901760
    %208 = vmatprep.subr.mxu0 %v207
    %v209 = vand.u32 %v144, 4294901760
    %210 = vmatpush1.msra.mxu0 %v209
    %v211 = vand.u32 %v143, 4294901760
    %212 = vmatprep.subr.mxu0 %v211
    %v213 = vand.u32 %v142, 4294901760
    %214 = vmatpush1.msra.mxu0 %v213
    %215 = vmatprep.subr.mxu0 0.0
    %216 = vmatpush2.msra.mxu0 0.0
    %217 = vmatprep.subr.mxu0 0.0
    %218 = vmatpush2.msra.mxu0 0.0
    %219 = vmatprep.subr.mxu0 0.0
    %220 = vmatpush2.msra.mxu0 0.0
    %221 = vmatprep.subr.mxu0 0.0
    %222 = vmatpush2.msra.mxu0 0.0
    %223 = vmatprep.subr.mxu0 0.0
    %224 = vmatpush2.msra.mxu0 0.0
    %225 = vmatprep.subr.mxu0 0.0
    %226 = vmatpush2.msra.mxu0 0.0
    %227 = vmatprep.subr.mxu0 0.0
    %228 = vmatpush2.msra.mxu0 0.0
    %229 = vmatprep.subr.mxu0 0.0
    %230 = vmatpush2.msra.mxu0 0.0
    %231 = vmatprep.subr.mxu0 0.0
    %232 = vmatpush2.msra.mxu0 0.0
    %233 = vmatprep.subr.mxu0 0.0
    %234 = vmatpush2.msra.mxu0 0.0
    %235 = vmatprep.subr.mxu0 0.0
    %236 = vmatpush2.msra.mxu0 0.0
    %237 = vmatprep.subr.mxu0 0.0
    %238 = vmatpush2.msra.mxu0 0.0
    %239 = vmatprep.subr.mxu0 0.0
    %240 = vmatpush2.msra.mxu0 0.0
    %241 = vmatprep.subr.mxu0 0.0
    %242 = vmatpush2.msra.mxu0 0.0
    %243 = vmatprep.subr.mxu0 0.0
    %244 = vmatpush2.msra.mxu0 0.0
    %245 = vmatprep.subr.mxu0 0.0
    %246 = vmatpush2.msra.mxu0 0.0
    %247 = vmatprep.mubr.f32.mxu0 0.0
    %v248 = vand.u32 %v167, 4294901760
    %v249 = vsub.f32 %v167, %v248
    %v250 = vand.u32 %v249, 4294901760
    %v251 = vsub.f32 %v249, %v250
    %v252 = vand.u32 %v251, 4294901760
    %253 = vmatmul.mubr.f32.gmra.mxu0 %v252
    %v254 = vpop.f32.mrf.mxu0
    %v255 = vadd.f32 %v152, %v254
    %v256 = vpop.f32.mrf.mxu0
    %v257 = vadd.f32 %v152, %v256
    %258 = vmatprep.mubr.f32.mxu0 0.0
    %v259 = vand.u32 %v169, 4294901760
    %v260 = vsub.f32 %v169, %v259
    %v261 = vand.u32 %v260, 4294901760
    %v262 = vsub.f32 %v260, %v261
    %v263 = vand.u32 %v262, 4294901760
    %264 = vmatmul.mubr.f32.gmra.mxu0 %v263
    %v265 = vpop.f32.mrf.mxu0
    %v266 = vadd.f32 %v156, %v265
    %v267 = vpop.f32.mrf.mxu0
    %v268 = vadd.f32 %v156, %v267
    %269 = vmatprep.mubr.f32.mxu0 0.0
    %v270 = vand.u32 %v171, 4294901760
    %v271 = vsub.f32 %v171, %v270
    %v272 = vand.u32 %v271, 4294901760
    %v273 = vsub.f32 %v271, %v272
    %v274 = vand.u32 %v273, 4294901760
    %275 = vmatmul.mubr.f32.gmra.mxu0 %v274
    %v276 = vpop.f32.mrf.mxu0
    %v277 = vadd.f32 %v160, %v276
    %v278 = vpop.f32.mrf.mxu0
    %v279 = vadd.f32 %v160, %v278
    %280 = vmatprep.mubr.f32.mxu0 0.0
    %v281 = vand.u32 %v173, 4294901760
    %v282 = vsub.f32 %v173, %v281
    %v283 = vand.u32 %v282, 4294901760
    %v284 = vsub.f32 %v282, %v283
    %v285 = vand.u32 %v284, 4294901760
    %286 = vmatmul.mubr.f32.gmra.mxu0 %v285
    %v287 = vpop.f32.mrf.mxu0
    %v288 = vadd.f32 %v164, %v287
    %v289 = vpop.f32.mrf.mxu0
    %v290 = vadd.f32 %v164, %v289
    %291 = vdwg.mxu0
    %292 = vmatprep.subr.mxu0 0.0
    %293 = vmatpush1.msra.mxu0 0.0
    %294 = vmatprep.subr.mxu0 0.0
    %295 = vmatpush1.msra.mxu0 0.0
    %296 = vmatprep.subr.mxu0 0.0
    %297 = vmatpush1.msra.mxu0 0.0
    %298 = vmatprep.subr.mxu0 0.0
    %299 = vmatpush1.msra.mxu0 0.0
    %300 = vmatprep.subr.mxu0 0.0
    %301 = vmatpush1.msra.mxu0 0.0
    %302 = vmatprep.subr.mxu0 0.0
    %303 = vmatpush1.msra.mxu0 0.0
    %304 = vmatprep.subr.mxu0 0.0
    %305 = vmatpush1.msra.mxu0 0.0
    %306 = vmatprep.subr.mxu0 0.0
    %307 = vmatpush1.msra.mxu0 0.0
    %308 = vmatprep.subr.mxu0 0.0
    %309 = vmatpush1.msra.mxu0 0.0
    %310 = vmatprep.subr.mxu0 0.0
    %311 = vmatpush1.msra.mxu0 0.0
    %312 = vmatprep.subr.mxu0 0.0
    %313 = vmatpush1.msra.mxu0 0.0
    %314 = vmatprep.subr.mxu0 0.0
    %315 = vmatpush1.msra.mxu0 0.0
    %v316 = vand.u32 %v149, 4294901760
    %v317 = vsub.f32 %v149, %v316
    %v318 = vand.u32 %v317, 4294901760
    %v319 = vsub.f32 %v317, %v318
    %v320 = vand.u32 %v319, 4294901760
    %321 = vmatprep.subr.mxu0 %v320
    %v322 = vand.u32 %v148, 4294901760
    %v323 = vsub.f32 %v148, %v322
    %v324 = vand.u32 %v323, 4294901760
    %v325 = vsub.f32 %v323, %v324
    %v326 = vand.u32 %v325, 4294901760
    %327 = vmatpush1.msra.mxu0 %v326
    %v328 = vand.u32 %v147, 4294901760
    %v329 = vsub.f32 %v147, %v328
    %v330 = vand.u32 %v329, 4294901760
    %v331 = vsub.f32 %v329, %v330
    %v332 = vand.u32 %v331, 4294901760
    %333 = vmatprep.subr.mxu0 %v332
    %v334 = vand.u32 %v146, 4294901760
    %v335 = vsub.f32 %v146, %v334
    %v336 = vand.u32 %v335, 4294901760
    %v337 = vsub.f32 %v335, %v336
    %v338 = vand.u32 %v337, 4294901760
    %339 = vmatpush1.msra.mxu0 %v338
    %v340 = vand.u32 %v145, 4294901760
    %v341 = vsub.f32 %v145, %v340
    %v342 = vand.u32 %v341, 4294901760
    %v343 = vsub.f32 %v341, %v342
    %v344 = vand.u32 %v343, 4294901760
    %345 = vmatprep.subr.mxu0 %v344
    %v346 = vand.u32 %v144, 4294901760
    %v347 = vsub.f32 %v144, %v346
    %v348 = vand.u32 %v347, 4294901760
    %v349 = vsub.f32 %v347, %v348
    %v350 = vand.u32 %v349, 4294901760
    %351 = vmatpush1.msra.mxu0 %v350
    %v352 = vand.u32 %v143, 4294901760
    %v353 = vsub.f32 %v143, %v352
    %v354 = vand.u32 %v353, 4294901760
    %v355 = vsub.f32 %v353, %v354
    %v356 = vand.u32 %v355, 4294901760
    %357 = vmatprep.subr.mxu0 %v356
    %v358 = vand.u32 %v142, 4294901760
    %v359 = vsub.f32 %v142, %v358
    %v360 = vand.u32 %v359, 4294901760
    %v361 = vsub.f32 %v359, %v360
    %v362 = vand.u32 %v361, 4294901760
    %363 = vmatpush1.msra.mxu0 %v362
    %364 = vmatprep.subr.mxu0 0.0
    %365 = vmatpush2.msra.mxu0 0.0
    %366 = vmatprep.subr.mxu0 0.0
    %367 = vmatpush2.msra.mxu0 0.0
    %368 = vmatprep.subr.mxu0 0.0
    %369 = vmatpush2.msra.mxu0 0.0
    %370 = vmatprep.subr.mxu0 0.0
    %371 = vmatpush2.msra.mxu0 0.0
    %372 = vmatprep.subr.mxu0 0.0
    %373 = vmatpush2.msra.mxu0 0.0
    %374 = vmatprep.subr.mxu0 0.0
    %375 = vmatpush2.msra.mxu0 0.0
    %376 = vmatprep.subr.mxu0 0.0
    %377 = vmatpush2.msra.mxu0 0.0
    %378 = vmatprep.subr.mxu0 0.0
    %379 = vmatpush2.msra.mxu0 0.0
    %380 = vmatprep.subr.mxu0 0.0
    %381 = vmatpush2.msra.mxu0 0.0
    %382 = vmatprep.subr.mxu0 0.0
    %383 = vmatpush2.msra.mxu0 0.0
    %384 = vmatprep.subr.mxu0 0.0
    %385 = vmatpush2.msra.mxu0 0.0
    %386 = vmatprep.subr.mxu0 0.0
    %387 = vmatpush2.msra.mxu0 0.0
    %388 = vmatprep.subr.mxu0 0.0
    %389 = vmatpush2.msra.mxu0 0.0
    %390 = vmatprep.subr.mxu0 0.0
    %391 = vmatpush2.msra.mxu0 0.0
    %392 = vmatprep.subr.mxu0 0.0
    %393 = vmatpush2.msra.mxu0 0.0
    %394 = vmatprep.subr.mxu0 0.0
    %395 = vmatpush2.msra.mxu0 0.0
    %396 = vmatprep.mubr.f32.mxu0 0.0
    %v397 = vand.u32 %v167, 4294901760
    %398 = vmatmul.mubr.f32.gmra.mxu0 %v397
    %v399 = vpop.f32.mrf.mxu0
    %v400 = vadd.f32 %v255, %v399
    %v401 = vpop.f32.mrf.mxu0
    %v402 = vadd.f32 %v257, %v401
    %403 = vmatprep.mubr.f32.mxu0 0.0
    %v404 = vand.u32 %v169, 4294901760
    %405 = vmatmul.mubr.f32.gmra.mxu0 %v404
    %v406 = vpop.f32.mrf.mxu0
    %v407 = vadd.f32 %v266, %v406
    %v408 = vpop.f32.mrf.mxu0
    %v409 = vadd.f32 %v268, %v408
    %410 = vmatprep.mubr.f32.mxu0 0.0
    %v411 = vand.u32 %v171, 4294901760
    %412 = vmatmul.mubr.f32.gmra.mxu0 %v411
    %v413 = vpop.f32.mrf.mxu0
    %v414 = vadd.f32 %v277, %v413
    %v415 = vpop.f32.mrf.mxu0
    %v416 = vadd.f32 %v279, %v415
    %417 = vmatprep.mubr.f32.mxu0 0.0
    %v418 = vand.u32 %v173, 4294901760
    %419 = vmatmul.mubr.f32.gmra.mxu0 %v418
    %v420 = vpop.f32.mrf.mxu0
    %v421 = vadd.f32 %v288, %v420
    %v422 = vpop.f32.mrf.mxu0
    %v423 = vadd.f32 %v290, %v422
    %424 = vdwg.mxu0
    %425 = vmatprep.subr.mxu0 0.0
    %426 = vmatpush1.msra.mxu0 0.0
    %427 = vmatprep.subr.mxu0 0.0
    %428 = vmatpush1.msra.mxu0 0.0
    %429 = vmatprep.subr.mxu0 0.0
    %430 = vmatpush1.msra.mxu0 0.0
    %431 = vmatprep.subr.mxu0 0.0
    %432 = vmatpush1.msra.mxu0 0.0
    %433 = vmatprep.subr.mxu0 0.0
    %434 = vmatpush1.msra.mxu0 0.0
    %435 = vmatprep.subr.mxu0 0.0
    %436 = vmatpush1.msra.mxu0 0.0
    %437 = vmatprep.subr.mxu0 0.0
    %438 = vmatpush1.msra.mxu0 0.0
    %439 = vmatprep.subr.mxu0 0.0
    %440 = vmatpush1.msra.mxu0 0.0
    %441 = vmatprep.subr.mxu0 0.0
    %442 = vmatpush1.msra.mxu0 0.0
    %443 = vmatprep.subr.mxu0 0.0
    %444 = vmatpush1.msra.mxu0 0.0
    %445 = vmatprep.subr.mxu0 0.0
    %446 = vmatpush1.msra.mxu0 0.0
    %447 = vmatprep.subr.mxu0 0.0
    %448 = vmatpush1.msra.mxu0 0.0
    %v449 = vand.u32 %v149, 4294901760
    %v450 = vsub.f32 %v149, %v449
    %451 = vmatprep.subr.mxu0 %v450
    %v452 = vand.u32 %v148, 4294901760
    %v453 = vsub.f32 %v148, %v452
    %454 = vmatpush1.msra.mxu0 %v453
    %v455 = vand.u32 %v147, 4294901760
    %v456 = vsub.f32 %v147, %v455
    %457 = vmatprep.subr.mxu0 %v456
    %v458 = vand.u32 %v146, 4294901760
    %v459 = vsub.f32 %v146, %v458
    %460 = vmatpush1.msra.mxu0 %v459
    %v461 = vand.u32 %v145, 4294901760
    %v462 = vsub.f32 %v145, %v461
    %463 = vmatprep.subr.mxu0 %v462
    %v464 = vand.u32 %v144, 4294901760
    %v465 = vsub.f32 %v144, %v464
    %466 = vmatpush1.msra.mxu0 %v465
    %v467 = vand.u32 %v143, 4294901760
    %v468 = vsub.f32 %v143, %v467
    %469 = vmatprep.subr.mxu0 %v468
    %v470 = vand.u32 %v142, 4294901760
    %v471 = vsub.f32 %v142, %v470
    %472 = vmatpush1.msra.mxu0 %v471
    %473 = vmatprep.subr.mxu0 0.0
    %474 = vmatpush2.msra.mxu0 0.0
    %475 = vmatprep.subr.mxu0 0.0
    %476 = vmatpush2.msra.mxu0 0.0
    %477 = vmatprep.subr.mxu0 0.0
    %478 = vmatpush2.msra.mxu0 0.0
    %479 = vmatprep.subr.mxu0 0.0
    %480 = vmatpush2.msra.mxu0 0.0
    %481 = vmatprep.subr.mxu0 0.0
    %482 = vmatpush2.msra.mxu0 0.0
    %483 = vmatprep.subr.mxu0 0.0
    %484 = vmatpush2.msra.mxu0 0.0
    %485 = vmatprep.subr.mxu0 0.0
    %486 = vmatpush2.msra.mxu0 0.0
    %487 = vmatprep.subr.mxu0 0.0
    %488 = vmatpush2.msra.mxu0 0.0
    %489 = vmatprep.subr.mxu0 0.0
    %490 = vmatpush2.msra.mxu0 0.0
    %491 = vmatprep.subr.mxu0 0.0
    %492 = vmatpush2.msra.mxu0 0.0
    %493 = vmatprep.subr.mxu0 0.0
    %494 = vmatpush2.msra.mxu0 0.0
    %495 = vmatprep.subr.mxu0 0.0
    %496 = vmatpush2.msra.mxu0 0.0
    %497 = vmatprep.subr.mxu0 0.0
    %498 = vmatpush2.msra.mxu0 0.0
    %499 = vmatprep.subr.mxu0 0.0
    %500 = vmatpush2.msra.mxu0 0.0
    %501 = vmatprep.subr.mxu0 0.0
    %502 = vmatpush2.msra.mxu0 0.0
    %503 = vmatprep.subr.mxu0 0.0
    %504 = vmatpush2.msra.mxu0 0.0
    %505 = vmatprep.mubr.f32.mxu0 0.0
    %v506 = vand.u32 %v167, 4294901760
    %v507 = vsub.f32 %v167, %v506
    %508 = vmatmul.mubr.f32.gmra.mxu0 %v507
    %v509 = vpop.f32.mrf.mxu0
    %v510 = vadd.f32 %v400, %v509
    %v511 = vpop.f32.mrf.mxu0
    %v512 = vadd.f32 %v402, %v511
    %513 = vmatprep.mubr.f32.mxu0 0.0
    %v514 = vand.u32 %v169, 4294901760
    %v515 = vsub.f32 %v169, %v514
    %516 = vmatmul.mubr.f32.gmra.mxu0 %v515
    %v517 = vpop.f32.mrf.mxu0
    %v518 = vadd.f32 %v407, %v517
    %v519 = vpop.f32.mrf.mxu0
    %v520 = vadd.f32 %v409, %v519
    %521 = vmatprep.mubr.f32.mxu0 0.0
    %v522 = vand.u32 %v171, 4294901760
    %v523 = vsub.f32 %v171, %v522
    %524 = vmatmul.mubr.f32.gmra.mxu0 %v523
    %v525 = vpop.f32.mrf.mxu0
    %v526 = vadd.f32 %v414, %v525
    %v527 = vpop.f32.mrf.mxu0
    %v528 = vadd.f32 %v416, %v527
    %529 = vmatprep.mubr.f32.mxu0 0.0
    %v530 = vand.u32 %v173, 4294901760
    %v531 = vsub.f32 %v173, %v530
    %532 = vmatmul.mubr.f32.gmra.mxu0 %v531
    %v533 = vpop.f32.mrf.mxu0
    %v534 = vadd.f32 %v421, %v533
    %v535 = vpop.f32.mrf.mxu0
    %v536 = vadd.f32 %v423, %v535
    %537 = vdwg.mxu0
    %538 = vmatprep.subr.mxu0 0.0
    %539 = vmatpush1.msra.mxu0 0.0
    %540 = vmatprep.subr.mxu0 0.0
    %541 = vmatpush1.msra.mxu0 0.0
    %542 = vmatprep.subr.mxu0 0.0
    %543 = vmatpush1.msra.mxu0 0.0
    %544 = vmatprep.subr.mxu0 0.0
    %545 = vmatpush1.msra.mxu0 0.0
    %546 = vmatprep.subr.mxu0 0.0
    %547 = vmatpush1.msra.mxu0 0.0
    %548 = vmatprep.subr.mxu0 0.0
    %549 = vmatpush1.msra.mxu0 0.0
    %550 = vmatprep.subr.mxu0 0.0
    %551 = vmatpush1.msra.mxu0 0.0
    %552 = vmatprep.subr.mxu0 0.0
    %553 = vmatpush1.msra.mxu0 0.0
    %554 = vmatprep.subr.mxu0 0.0
    %555 = vmatpush1.msra.mxu0 0.0
    %556 = vmatprep.subr.mxu0 0.0
    %557 = vmatpush1.msra.mxu0 0.0
    %558 = vmatprep.subr.mxu0 0.0
    %559 = vmatpush1.msra.mxu0 0.0
    %560 = vmatprep.subr.mxu0 0.0
    %561 = vmatpush1.msra.mxu0 0.0
    %v562 = vand.u32 %v149, 4294901760
    %563 = vmatprep.subr.mxu0 %v562
    %v564 = vand.u32 %v148, 4294901760
    %565 = vmatpush1.msra.mxu0 %v564
    %v566 = vand.u32 %v147, 4294901760
    %567 = vmatprep.subr.mxu0 %v566
    %v568 = vand.u32 %v146, 4294901760
    %569 = vmatpush1.msra.mxu0 %v568
    %v570 = vand.u32 %v145, 4294901760
    %571 = vmatprep.subr.mxu0 %v570
    %v572 = vand.u32 %v144, 4294901760
    %573 = vmatpush1.msra.mxu0 %v572
    %v574 = vand.u32 %v143, 4294901760
    %575 = vmatprep.subr.mxu0 %v574
    %v576 = vand.u32 %v142, 4294901760
    %577 = vmatpush1.msra.mxu0 %v576
    %578 = vmatprep.subr.mxu0 0.0
    %579 = vmatpush2.msra.mxu0 0.0
    %580 = vmatprep.subr.mxu0 0.0
    %581 = vmatpush2.msra.mxu0 0.0
    %582 = vmatprep.subr.mxu0 0.0
    %583 = vmatpush2.msra.mxu0 0.0
    %584 = vmatprep.subr.mxu0 0.0
    %585 = vmatpush2.msra.mxu0 0.0
    %586 = vmatprep.subr.mxu0 0.0
    %587 = vmatpush2.msra.mxu0 0.0
    %588 = vmatprep.subr.mxu0 0.0
    %589 = vmatpush2.msra.mxu0 0.0
    %590 = vmatprep.subr.mxu0 0.0
    %591 = vmatpush2.msra.mxu0 0.0
    %592 = vmatprep.subr.mxu0 0.0
    %593 = vmatpush2.msra.mxu0 0.0
    %594 = vmatprep.subr.mxu0 0.0
    %595 = vmatpush2.msra.mxu0 0.0
    %596 = vmatprep.subr.mxu0 0.0
    %597 = vmatpush2.msra.mxu0 0.0
    %598 = vmatprep.subr.mxu0 0.0
    %599 = vmatpush2.msra.mxu0 0.0
    %600 = vmatprep.subr.mxu0 0.0
    %601 = vmatpush2.msra.mxu0 0.0
    %602 = vmatprep.subr.mxu0 0.0
    %603 = vmatpush2.msra.mxu0 0.0
    %604 = vmatprep.subr.mxu0 0.0
    %605 = vmatpush2.msra.mxu0 0.0
    %606 = vmatprep.subr.mxu0 0.0
    %607 = vmatpush2.msra.mxu0 0.0
    %608 = vmatprep.subr.mxu0 0.0
    %609 = vmatpush2.msra.mxu0 0.0
    %610 = vmatprep.mubr.f32.mxu0 0.0
    %v611 = vand.u32 %v167, 4294901760
    %v612 = vsub.f32 %v167, %v611
    %v613 = vand.u32 %v612, 4294901760
    %614 = vmatmul.mubr.f32.gmra.mxu0 %v613
    %v615 = vpop.f32.mrf.mxu0
    %v616 = vadd.f32 %v510, %v615
    %v617 = vpop.f32.mrf.mxu0
    %v618 = vadd.f32 %v512, %v617
    %619 = vmatprep.mubr.f32.mxu0 0.0
    %v620 = vand.u32 %v169, 4294901760
    %v621 = vsub.f32 %v169, %v620
    %v622 = vand.u32 %v621, 4294901760
    %623 = vmatmul.mubr.f32.gmra.mxu0 %v622
    %v624 = vpop.f32.mrf.mxu0
    %v625 = vadd.f32 %v518, %v624
    %v626 = vpop.f32.mrf.mxu0
    %v627 = vadd.f32 %v520, %v626
    %628 = vmatprep.mubr.f32.mxu0 0.0
    %v629 = vand.u32 %v171, 4294901760
    %v630 = vsub.f32 %v171, %v629
    %v631 = vand.u32 %v630, 4294901760
    %632 = vmatmul.mubr.f32.gmra.mxu0 %v631
    %v633 = vpop.f32.mrf.mxu0
    %v634 = vadd.f32 %v526, %v633
    %v635 = vpop.f32.mrf.mxu0
    %v636 = vadd.f32 %v528, %v635
    %637 = vmatprep.mubr.f32.mxu0 0.0
    %v638 = vand.u32 %v173, 4294901760
    %v639 = vsub.f32 %v173, %v638
    %v640 = vand.u32 %v639, 4294901760
    %641 = vmatmul.mubr.f32.gmra.mxu0 %v640
    %v642 = vpop.f32.mrf.mxu0
    %v643 = vadd.f32 %v534, %v642
    %v644 = vpop.f32.mrf.mxu0
    %v645 = vadd.f32 %v536, %v644
    %646 = vdwg.mxu0
    %647 = vmatprep.subr.mxu0 0.0
    %648 = vmatpush1.msra.mxu0 0.0
    %649 = vmatprep.subr.mxu0 0.0
    %650 = vmatpush1.msra.mxu0 0.0
    %651 = vmatprep.subr.mxu0 0.0
    %652 = vmatpush1.msra.mxu0 0.0
    %653 = vmatprep.subr.mxu0 0.0
    %654 = vmatpush1.msra.mxu0 0.0
    %655 = vmatprep.subr.mxu0 0.0
    %656 = vmatpush1.msra.mxu0 0.0
    %657 = vmatprep.subr.mxu0 0.0
    %658 = vmatpush1.msra.mxu0 0.0
    %659 = vmatprep.subr.mxu0 0.0
    %660 = vmatpush1.msra.mxu0 0.0
    %661 = vmatprep.subr.mxu0 0.0
    %662 = vmatpush1.msra.mxu0 0.0
    %663 = vmatprep.subr.mxu0 0.0
    %664 = vmatpush1.msra.mxu0 0.0
    %665 = vmatprep.subr.mxu0 0.0
    %666 = vmatpush1.msra.mxu0 0.0
    %667 = vmatprep.subr.mxu0 0.0
    %668 = vmatpush1.msra.mxu0 0.0
    %669 = vmatprep.subr.mxu0 0.0
    %670 = vmatpush1.msra.mxu0 0.0
    %v671 = vand.u32 %v149, 4294901760
    %v672 = vsub.f32 %v149, %v671
    %v673 = vand.u32 %v672, 4294901760
    %674 = vmatprep.subr.mxu0 %v673
    %v675 = vand.u32 %v148, 4294901760
    %v676 = vsub.f32 %v148, %v675
    %v677 = vand.u32 %v676, 4294901760
    %678 = vmatpush1.msra.mxu0 %v677
    %v679 = vand.u32 %v147, 4294901760
    %v680 = vsub.f32 %v147, %v679
    %v681 = vand.u32 %v680, 4294901760
    %682 = vmatprep.subr.mxu0 %v681
    %v683 = vand.u32 %v146, 4294901760
    %v684 = vsub.f32 %v146, %v683
    %v685 = vand.u32 %v684, 4294901760
    %686 = vmatpush1.msra.mxu0 %v685
    %v687 = vand.u32 %v145, 4294901760
    %v688 = vsub.f32 %v145, %v687
    %v689 = vand.u32 %v688, 4294901760
    %690 = vmatprep.subr.mxu0 %v689
    %v691 = vand.u32 %v144, 4294901760
    %v692 = vsub.f32 %v144, %v691
    %v693 = vand.u32 %v692, 4294901760
    %694 = vmatpush1.msra.mxu0 %v693
    %v695 = vand.u32 %v143, 4294901760
    %v696 = vsub.f32 %v143, %v695
    %v697 = vand.u32 %v696, 4294901760
    %698 = vmatprep.subr.mxu0 %v697
    %v699 = vand.u32 %v142, 4294901760
    %v700 = vsub.f32 %v142, %v699
    %v701 = vand.u32 %v700, 4294901760
    %702 = vmatpush1.msra.mxu0 %v701
    %703 = vmatprep.subr.mxu0 0.0
    %704 = vmatpush2.msra.mxu0 0.0
    %705 = vmatprep.subr.mxu0 0.0
    %706 = vmatpush2.msra.mxu0 0.0
    %707 = vmatprep.subr.mxu0 0.0
    %708 = vmatpush2.msra.mxu0 0.0
    %709 = vmatprep.subr.mxu0 0.0
    %710 = vmatpush2.msra.mxu0 0.0
    %711 = vmatprep.subr.mxu0 0.0
    %712 = vmatpush2.msra.mxu0 0.0
    %713 = vmatprep.subr.mxu0 0.0
    %714 = vmatpush2.msra.mxu0 0.0
    %715 = vmatprep.subr.mxu0 0.0
    %716 = vmatpush2.msra.mxu0 0.0
    %717 = vmatprep.subr.mxu0 0.0
    %718 = vmatpush2.msra.mxu0 0.0
    %719 = vmatprep.subr.mxu0 0.0
    %720 = vmatpush2.msra.mxu0 0.0
    %721 = vmatprep.subr.mxu0 0.0
    %722 = vmatpush2.msra.mxu0 0.0
    %723 = vmatprep.subr.mxu0 0.0
    %724 = vmatpush2.msra.mxu0 0.0
    %725 = vmatprep.subr.mxu0 0.0
    %726 = vmatpush2.msra.mxu0 0.0
    %727 = vmatprep.subr.mxu0 0.0
    %728 = vmatpush2.msra.mxu0 0.0
    %729 = vmatprep.subr.mxu0 0.0
    %730 = vmatpush2.msra.mxu0 0.0
    %731 = vmatprep.subr.mxu0 0.0
    %732 = vmatpush2.msra.mxu0 0.0
    %733 = vmatprep.subr.mxu0 0.0
    %734 = vmatpush2.msra.mxu0 0.0
    %735 = vmatprep.mubr.f32.mxu0 0.0
    %v736 = vand.u32 %v167, 4294901760
    %737 = vmatmul.mubr.f32.gmra.mxu0 %v736
    %v738 = vpop.f32.mrf.mxu0
    %v739 = vadd.f32 %v616, %v738
    %v740 = vpop.f32.mrf.mxu0
    %v741 = vadd.f32 %v618, %v740
    %742 = vmatprep.mubr.f32.mxu0 0.0
    %v743 = vand.u32 %v169, 4294901760
    %744 = vmatmul.mubr.f32.gmra.mxu0 %v743
    %v745 = vpop.f32.mrf.mxu0
    %v746 = vadd.f32 %v625, %v745
    %v747 = vpop.f32.mrf.mxu0
    %v748 = vadd.f32 %v627, %v747
    %749 = vmatprep.mubr.f32.mxu0 0.0
    %v750 = vand.u32 %v171, 4294901760
    %751 = vmatmul.mubr.f32.gmra.mxu0 %v750
    %v752 = vpop.f32.mrf.mxu0
    %v753 = vadd.f32 %v634, %v752
    %v754 = vpop.f32.mrf.mxu0
    %v755 = vadd.f32 %v636, %v754
    %756 = vmatprep.mubr.f32.mxu0 0.0
    %v757 = vand.u32 %v173, 4294901760
    %758 = vmatmul.mubr.f32.gmra.mxu0 %v757
    %v759 = vpop.f32.mrf.mxu0
    %v760 = vadd.f32 %v643, %v759
    %v761 = vpop.f32.mrf.mxu0
    %v762 = vadd.f32 %v645, %v761
    %763 = vdwg.mxu0
    %764 = vmatprep.subr.mxu0 0.0
    %765 = vmatpush1.msra.mxu0 0.0
    %766 = vmatprep.subr.mxu0 0.0
    %767 = vmatpush1.msra.mxu0 0.0
    %768 = vmatprep.subr.mxu0 0.0
    %769 = vmatpush1.msra.mxu0 0.0
    %770 = vmatprep.subr.mxu0 0.0
    %771 = vmatpush1.msra.mxu0 0.0
    %772 = vmatprep.subr.mxu0 0.0
    %773 = vmatpush1.msra.mxu0 0.0
    %774 = vmatprep.subr.mxu0 0.0
    %775 = vmatpush1.msra.mxu0 0.0
    %776 = vmatprep.subr.mxu0 0.0
    %777 = vmatpush1.msra.mxu0 0.0
    %778 = vmatprep.subr.mxu0 0.0
    %779 = vmatpush1.msra.mxu0 0.0
    %780 = vmatprep.subr.mxu0 0.0
    %781 = vmatpush1.msra.mxu0 0.0
    %782 = vmatprep.subr.mxu0 0.0
    %783 = vmatpush1.msra.mxu0 0.0
    %784 = vmatprep.subr.mxu0 0.0
    %785 = vmatpush1.msra.mxu0 0.0
    %786 = vmatprep.subr.mxu0 0.0
    %787 = vmatpush1.msra.mxu0 0.0
    %v788 = vand.u32 %v149, 4294901760
    %789 = vmatprep.subr.mxu0 %v788
    %v790 = vand.u32 %v148, 4294901760
    %791 = vmatpush1.msra.mxu0 %v790
    %v792 = vand.u32 %v147, 4294901760
    %793 = vmatprep.subr.mxu0 %v792
    %v794 = vand.u32 %v146, 4294901760
    %795 = vmatpush1.msra.mxu0 %v794
    %v796 = vand.u32 %v145, 4294901760
    %797 = vmatprep.subr.mxu0 %v796
    %v798 = vand.u32 %v144, 4294901760
    %799 = vmatpush1.msra.mxu0 %v798
    %v800 = vand.u32 %v143, 4294901760
    %801 = vmatprep.subr.mxu0 %v800
    %v802 = vand.u32 %v142, 4294901760
    %803 = vmatpush1.msra.mxu0 %v802
    %804 = vmatprep.subr.mxu0 0.0
    %805 = vmatpush2.msra.mxu0 0.0
    %806 = vmatprep.subr.mxu0 0.0
    %807 = vmatpush2.msra.mxu0 0.0
    %808 = vmatprep.subr.mxu0 0.0
    %809 = vmatpush2.msra.mxu0 0.0
    %810 = vmatprep.subr.mxu0 0.0
    %811 = vmatpush2.msra.mxu0 0.0
    %812 = vmatprep.subr.mxu0 0.0
    %813 = vmatpush2.msra.mxu0 0.0
    %814 = vmatprep.subr.mxu0 0.0
    %815 = vmatpush2.msra.mxu0 0.0
    %816 = vmatprep.subr.mxu0 0.0
    %817 = vmatpush2.msra.mxu0 0.0
    %818 = vmatprep.subr.mxu0 0.0
    %819 = vmatpush2.msra.mxu0 0.0
    %820 = vmatprep.subr.mxu0 0.0
    %821 = vmatpush2.msra.mxu0 0.0
    %822 = vmatprep.subr.mxu0 0.0
    %823 = vmatpush2.msra.mxu0 0.0
    %824 = vmatprep.subr.mxu0 0.0
    %825 = vmatpush2.msra.mxu0 0.0
    %826 = vmatprep.subr.mxu0 0.0
    %827 = vmatpush2.msra.mxu0 0.0
    %828 = vmatprep.subr.mxu0 0.0
    %829 = vmatpush2.msra.mxu0 0.0
    %830 = vmatprep.subr.mxu0 0.0
    %831 = vmatpush2.msra.mxu0 0.0
    %832 = vmatprep.subr.mxu0 0.0
    %833 = vmatpush2.msra.mxu0 0.0
    %834 = vmatprep.subr.mxu0 0.0
    %835 = vmatpush2.msra.mxu0 0.0
    %836 = vmatprep.mubr.f32.mxu0 0.0
    %v837 = vand.u32 %v167, 4294901760
    %838 = vmatmul.mubr.f32.gmra.mxu0 %v837
    %v839 = vpop.f32.mrf.mxu0
    %v840 = vadd.f32 %v739, %v839
    %v841 = vpop.f32.mrf.mxu0
    %v842 = vadd.f32 %v741, %v841
    %843 = vmatprep.mubr.f32.mxu0 0.0
    %v844 = vand.u32 %v169, 4294901760
    %845 = vmatmul.mubr.f32.gmra.mxu0 %v844
    %v846 = vpop.f32.mrf.mxu0
    %v847 = vadd.f32 %v746, %v846
    %v848 = vpop.f32.mrf.mxu0
    %v849 = vadd.f32 %v748, %v848
    %850 = vmatprep.mubr.f32.mxu0 0.0
    %v851 = vand.u32 %v171, 4294901760
    %852 = vmatmul.mubr.f32.gmra.mxu0 %v851
    %v853 = vpop.f32.mrf.mxu0
    %v854 = vadd.f32 %v753, %v853
    %v855 = vpop.f32.mrf.mxu0
    %v856 = vadd.f32 %v755, %v855
    %857 = vmatprep.mubr.f32.mxu0 0.0
    %v858 = vand.u32 %v173, 4294901760
    %859 = vmatmul.mubr.f32.gmra.mxu0 %v858
    %v860 = vpop.f32.mrf.mxu0
    %v861 = vadd.f32 %v760, %v860
    %v862 = vpop.f32.mrf.mxu0
    %v863 = vadd.f32 %v762, %v862
    %864 = vdwg.mxu0
    %v865 = vmax.f32 %v840, 0.0
    %v866 = vmax.f32 %v842, 0.0
    %v867 = vmax.f32 %v847, 0.0
    %v868 = vmax.f32 %v849, 0.0
    %v869 = vmax.f32 %v854, 0.0
    %v870 = vmax.f32 %v856, 0.0
    %v871 = vmax.f32 %v861, 0.0
    %v872 = vmax.f32 %v863, 0.0
    %874 = vset.pattern.permute.xlu0 32
    %875 = vperm.xlu0 %874, %v20
    %v876 = vpop.permute.xlu0 %875
    %v878 = vlaneseq
    %v879 = vshrl.u32 %v878, 7
    %v880 = vsub.s32 0, %v879
    %v881 = vrot.slane %v876, %v880
    %v882 = vsel %vm166, %v20, 0
    %884 = vmatprep.subr.mxu0 0.0
    %885 = vmatpush1.msra.mxu0 0.0
    %886 = vmatprep.subr.mxu0 0.0
    %887 = vmatpush1.msra.mxu0 0.0
    %888 = vmatprep.subr.mxu0 0.0
    %889 = vmatpush1.msra.mxu0 0.0
    %890 = vmatprep.subr.mxu0 0.0
    %891 = vmatpush1.msra.mxu0 0.0
    %892 = vmatprep.subr.mxu0 0.0
    %893 = vmatpush1.msra.mxu0 0.0
    %894 = vmatprep.subr.mxu0 0.0
    %895 = vmatpush1.msra.mxu0 0.0
    %896 = vmatprep.subr.mxu0 0.0
    %897 = vmatpush1.msra.mxu0 0.0
    %898 = vmatprep.subr.mxu0 0.0
    %899 = vmatpush1.msra.mxu0 0.0
    %900 = vmatprep.subr.mxu0 0.0
    %901 = vmatpush1.msra.mxu0 0.0
    %902 = vmatprep.subr.mxu0 0.0
    %903 = vmatpush1.msra.mxu0 0.0
    %904 = vmatprep.subr.mxu0 0.0
    %905 = vmatpush1.msra.mxu0 0.0
    %906 = vmatprep.subr.mxu0 0.0
    %907 = vmatpush1.msra.mxu0 0.0
    %v908 = vand.u32 %v872, 4294901760
    %909 = vmatprep.subr.mxu0 %v908
    %v910 = vand.u32 %v871, 4294901760
    %911 = vmatpush1.msra.mxu0 %v910
    %v912 = vand.u32 %v870, 4294901760
    %913 = vmatprep.subr.mxu0 %v912
    %v914 = vand.u32 %v869, 4294901760
    %915 = vmatpush1.msra.mxu0 %v914
    %v916 = vand.u32 %v868, 4294901760
    %917 = vmatprep.subr.mxu0 %v916
    %v918 = vand.u32 %v867, 4294901760
    %919 = vmatpush1.msra.mxu0 %v918
    %v920 = vand.u32 %v866, 4294901760
    %921 = vmatprep.subr.mxu0 %v920
    %v922 = vand.u32 %v865, 4294901760
    %923 = vmatpush1.msra.mxu0 %v922
    %924 = vmatprep.subr.mxu0 0.0
    %925 = vmatpush2.msra.mxu0 0.0
    %926 = vmatprep.subr.mxu0 0.0
    %927 = vmatpush2.msra.mxu0 0.0
    %928 = vmatprep.subr.mxu0 0.0
    %929 = vmatpush2.msra.mxu0 0.0
    %930 = vmatprep.subr.mxu0 0.0
    %931 = vmatpush2.msra.mxu0 0.0
    %932 = vmatprep.subr.mxu0 0.0
    %933 = vmatpush2.msra.mxu0 0.0
    %934 = vmatprep.subr.mxu0 0.0
    %935 = vmatpush2.msra.mxu0 0.0
    %936 = vmatprep.subr.mxu0 0.0
    %937 = vmatpush2.msra.mxu0 0.0
    %938 = vmatprep.subr.mxu0 0.0
    %939 = vmatpush2.msra.mxu0 0.0
    %940 = vmatprep.subr.mxu0 0.0
    %941 = vmatpush2.msra.mxu0 0.0
    %942 = vmatprep.subr.mxu0 0.0
    %943 = vmatpush2.msra.mxu0 0.0
    %944 = vmatprep.subr.mxu0 0.0
    %945 = vmatpush2.msra.mxu0 0.0
    %946 = vmatprep.subr.mxu0 0.0
    %947 = vmatpush2.msra.mxu0 0.0
    %948 = vmatprep.subr.mxu0 0.0
    %949 = vmatpush2.msra.mxu0 0.0
    %950 = vmatprep.subr.mxu0 0.0
    %951 = vmatpush2.msra.mxu0 0.0
    %952 = vmatprep.subr.mxu0 0.0
    %953 = vmatpush2.msra.mxu0 0.0
    %954 = vmatprep.subr.mxu0 0.0
    %955 = vmatpush2.msra.mxu0 0.0
    %956 = vmatprep.mubr.f32.mxu0 0.0
    %v957 = vand.u32 %v882, 4294901760
    %v958 = vsub.f32 %v882, %v957
    %v959 = vand.u32 %v958, 4294901760
    %v960 = vsub.f32 %v958, %v959
    %v961 = vand.u32 %v960, 4294901760
    %962 = vmatmul.mubr.f32.gmra.mxu0 %v961
    %v963 = vpop.f32.mrf.mxu0
    %v964 = vadd.f32 %v881, %v963
    %v965 = vpop.f32.mrf.mxu0
    %v966 = vadd.f32 %v881, %v965
    %967 = vdwg.mxu0
    %968 = vmatprep.subr.mxu0 0.0
    %969 = vmatpush1.msra.mxu0 0.0
    %970 = vmatprep.subr.mxu0 0.0
    %971 = vmatpush1.msra.mxu0 0.0
    %972 = vmatprep.subr.mxu0 0.0
    %973 = vmatpush1.msra.mxu0 0.0
    %974 = vmatprep.subr.mxu0 0.0
    %975 = vmatpush1.msra.mxu0 0.0
    %976 = vmatprep.subr.mxu0 0.0
    %977 = vmatpush1.msra.mxu0 0.0
    %978 = vmatprep.subr.mxu0 0.0
    %979 = vmatpush1.msra.mxu0 0.0
    %980 = vmatprep.subr.mxu0 0.0
    %981 = vmatpush1.msra.mxu0 0.0
    %982 = vmatprep.subr.mxu0 0.0
    %983 = vmatpush1.msra.mxu0 0.0
    %984 = vmatprep.subr.mxu0 0.0
    %985 = vmatpush1.msra.mxu0 0.0
    %986 = vmatprep.subr.mxu0 0.0
    %987 = vmatpush1.msra.mxu0 0.0
    %988 = vmatprep.subr.mxu0 0.0
    %989 = vmatpush1.msra.mxu0 0.0
    %990 = vmatprep.subr.mxu0 0.0
    %991 = vmatpush1.msra.mxu0 0.0
    %v992 = vand.u32 %v872, 4294901760
    %v993 = vsub.f32 %v872, %v992
    %v994 = vand.u32 %v993, 4294901760
    %v995 = vsub.f32 %v993, %v994
    %v996 = vand.u32 %v995, 4294901760
    %997 = vmatprep.subr.mxu0 %v996
    %v998 = vand.u32 %v871, 4294901760
    %v999 = vsub.f32 %v871, %v998
    %v1000 = vand.u32 %v999, 4294901760
    %v1001 = vsub.f32 %v999, %v1000
    %v1002 = vand.u32 %v1001, 4294901760
    %1003 = vmatpush1.msra.mxu0 %v1002
    %v1004 = vand.u32 %v870, 4294901760
    %v1005 = vsub.f32 %v870, %v1004
    %v1006 = vand.u32 %v1005, 4294901760
    %v1007 = vsub.f32 %v1005, %v1006
    %v1008 = vand.u32 %v1007, 4294901760
    %1009 = vmatprep.subr.mxu0 %v1008
    %v1010 = vand.u32 %v869, 4294901760
    %v1011 = vsub.f32 %v869, %v1010
    %v1012 = vand.u32 %v1011, 4294901760
    %v1013 = vsub.f32 %v1011, %v1012
    %v1014 = vand.u32 %v1013, 4294901760
    %1015 = vmatpush1.msra.mxu0 %v1014
    %v1016 = vand.u32 %v868, 4294901760
    %v1017 = vsub.f32 %v868, %v1016
    %v1018 = vand.u32 %v1017, 4294901760
    %v1019 = vsub.f32 %v1017, %v1018
    %v1020 = vand.u32 %v1019, 4294901760
    %1021 = vmatprep.subr.mxu0 %v1020
    %v1022 = vand.u32 %v867, 4294901760
    %v1023 = vsub.f32 %v867, %v1022
    %v1024 = vand.u32 %v1023, 4294901760
    %v1025 = vsub.f32 %v1023, %v1024
    %v1026 = vand.u32 %v1025, 4294901760
    %1027 = vmatpush1.msra.mxu0 %v1026
    %v1028 = vand.u32 %v866, 4294901760
    %v1029 = vsub.f32 %v866, %v1028
    %v1030 = vand.u32 %v1029, 4294901760
    %v1031 = vsub.f32 %v1029, %v1030
    %v1032 = vand.u32 %v1031, 4294901760
    %1033 = vmatprep.subr.mxu0 %v1032
    %v1034 = vand.u32 %v865, 4294901760
    %v1035 = vsub.f32 %v865, %v1034
    %v1036 = vand.u32 %v1035, 4294901760
    %v1037 = vsub.f32 %v1035, %v1036
    %v1038 = vand.u32 %v1037, 4294901760
    %1039 = vmatpush1.msra.mxu0 %v1038
    %1040 = vmatprep.subr.mxu0 0.0
    %1041 = vmatpush2.msra.mxu0 0.0
    %1042 = vmatprep.subr.mxu0 0.0
    %1043 = vmatpush2.msra.mxu0 0.0
    %1044 = vmatprep.subr.mxu0 0.0
    %1045 = vmatpush2.msra.mxu0 0.0
    %1046 = vmatprep.subr.mxu0 0.0
    %1047 = vmatpush2.msra.mxu0 0.0
    %1048 = vmatprep.subr.mxu0 0.0
    %1049 = vmatpush2.msra.mxu0 0.0
    %1050 = vmatprep.subr.mxu0 0.0
    %1051 = vmatpush2.msra.mxu0 0.0
    %1052 = vmatprep.subr.mxu0 0.0
    %1053 = vmatpush2.msra.mxu0 0.0
    %1054 = vmatprep.subr.mxu0 0.0
    %1055 = vmatpush2.msra.mxu0 0.0
    %1056 = vmatprep.subr.mxu0 0.0
    %1057 = vmatpush2.msra.mxu0 0.0
    %1058 = vmatprep.subr.mxu0 0.0
    %1059 = vmatpush2.msra.mxu0 0.0
    %1060 = vmatprep.subr.mxu0 0.0
    %1061 = vmatpush2.msra.mxu0 0.0
    %1062 = vmatprep.subr.mxu0 0.0
    %1063 = vmatpush2.msra.mxu0 0.0
    %1064 = vmatprep.subr.mxu0 0.0
    %1065 = vmatpush2.msra.mxu0 0.0
    %1066 = vmatprep.subr.mxu0 0.0
    %1067 = vmatpush2.msra.mxu0 0.0
    %1068 = vmatprep.subr.mxu0 0.0
    %1069 = vmatpush2.msra.mxu0 0.0
    %1070 = vmatprep.subr.mxu0 0.0
    %1071 = vmatpush2.msra.mxu0 0.0
    %1072 = vmatprep.mubr.f32.mxu0 0.0
    %v1073 = vand.u32 %v882, 4294901760
    %1074 = vmatmul.mubr.f32.gmra.mxu0 %v1073
    %v1075 = vpop.f32.mrf.mxu0
    %v1076 = vadd.f32 %v964, %v1075
    %v1077 = vpop.f32.mrf.mxu0
    %v1078 = vadd.f32 %v966, %v1077
    %1079 = vdwg.mxu0
    %1080 = vmatprep.subr.mxu0 0.0
    %1081 = vmatpush1.msra.mxu0 0.0
    %1082 = vmatprep.subr.mxu0 0.0
    %1083 = vmatpush1.msra.mxu0 0.0
    %1084 = vmatprep.subr.mxu0 0.0
    %1085 = vmatpush1.msra.mxu0 0.0
    %1086 = vmatprep.subr.mxu0 0.0
    %1087 = vmatpush1.msra.mxu0 0.0
    %1088 = vmatprep.subr.mxu0 0.0
    %1089 = vmatpush1.msra.mxu0 0.0
    %1090 = vmatprep.subr.mxu0 0.0
    %1091 = vmatpush1.msra.mxu0 0.0
    %1092 = vmatprep.subr.mxu0 0.0
    %1093 = vmatpush1.msra.mxu0 0.0
    %1094 = vmatprep.subr.mxu0 0.0
    %1095 = vmatpush1.msra.mxu0 0.0
    %1096 = vmatprep.subr.mxu0 0.0
    %1097 = vmatpush1.msra.mxu0 0.0
    %1098 = vmatprep.subr.mxu0 0.0
    %1099 = vmatpush1.msra.mxu0 0.0
    %1100 = vmatprep.subr.mxu0 0.0
    %1101 = vmatpush1.msra.mxu0 0.0
    %1102 = vmatprep.subr.mxu0 0.0
    %1103 = vmatpush1.msra.mxu0 0.0
    %v1104 = vand.u32 %v872, 4294901760
    %v1105 = vsub.f32 %v872, %v1104
    %1106 = vmatprep.subr.mxu0 %v1105
    %v1107 = vand.u32 %v871, 4294901760
    %v1108 = vsub.f32 %v871, %v1107
    %1109 = vmatpush1.msra.mxu0 %v1108
    %v1110 = vand.u32 %v870, 4294901760
    %v1111 = vsub.f32 %v870, %v1110
    %1112 = vmatprep.subr.mxu0 %v1111
    %v1113 = vand.u32 %v869, 4294901760
    %v1114 = vsub.f32 %v869, %v1113
    %1115 = vmatpush1.msra.mxu0 %v1114
    %v1116 = vand.u32 %v868, 4294901760
    %v1117 = vsub.f32 %v868, %v1116
    %1118 = vmatprep.subr.mxu0 %v1117
    %v1119 = vand.u32 %v867, 4294901760
    %v1120 = vsub.f32 %v867, %v1119
    %1121 = vmatpush1.msra.mxu0 %v1120
    %v1122 = vand.u32 %v866, 4294901760
    %v1123 = vsub.f32 %v866, %v1122
    %1124 = vmatprep.subr.mxu0 %v1123
    %v1125 = vand.u32 %v865, 4294901760
    %v1126 = vsub.f32 %v865, %v1125
    %1127 = vmatpush1.msra.mxu0 %v1126
    %1128 = vmatprep.subr.mxu0 0.0
    %1129 = vmatpush2.msra.mxu0 0.0
    %1130 = vmatprep.subr.mxu0 0.0
    %1131 = vmatpush2.msra.mxu0 0.0
    %1132 = vmatprep.subr.mxu0 0.0
    %1133 = vmatpush2.msra.mxu0 0.0
    %1134 = vmatprep.subr.mxu0 0.0
    %1135 = vmatpush2.msra.mxu0 0.0
    %1136 = vmatprep.subr.mxu0 0.0
    %1137 = vmatpush2.msra.mxu0 0.0
    %1138 = vmatprep.subr.mxu0 0.0
    %1139 = vmatpush2.msra.mxu0 0.0
    %1140 = vmatprep.subr.mxu0 0.0
    %1141 = vmatpush2.msra.mxu0 0.0
    %1142 = vmatprep.subr.mxu0 0.0
    %1143 = vmatpush2.msra.mxu0 0.0
    %1144 = vmatprep.subr.mxu0 0.0
    %1145 = vmatpush2.msra.mxu0 0.0
    %1146 = vmatprep.subr.mxu0 0.0
    %1147 = vmatpush2.msra.mxu0 0.0
    %1148 = vmatprep.subr.mxu0 0.0
    %1149 = vmatpush2.msra.mxu0 0.0
    %1150 = vmatprep.subr.mxu0 0.0
    %1151 = vmatpush2.msra.mxu0 0.0
    %1152 = vmatprep.subr.mxu0 0.0
    %1153 = vmatpush2.msra.mxu0 0.0
    %1154 = vmatprep.subr.mxu0 0.0
    %1155 = vmatpush2.msra.mxu0 0.0
    %1156 = vmatprep.subr.mxu0 0.0
    %1157 = vmatpush2.msra.mxu0 0.0
    %1158 = vmatprep.subr.mxu0 0.0
    %1159 = vmatpush2.msra.mxu0 0.0
    %1160 = vmatprep.mubr.f32.mxu0 0.0
    %v1161 = vand.u32 %v882, 4294901760
    %v1162 = vsub.f32 %v882, %v1161
    %1163 = vmatmul.mubr.f32.gmra.mxu0 %v1162
    %v1164 = vpop.f32.mrf.mxu0
    %v1165 = vadd.f32 %v1076, %v1164
    %v1166 = vpop.f32.mrf.mxu0
    %v1167 = vadd.f32 %v1078, %v1166
    %1168 = vdwg.mxu0
    %1169 = vmatprep.subr.mxu0 0.0
    %1170 = vmatpush1.msra.mxu0 0.0
    %1171 = vmatprep.subr.mxu0 0.0
    %1172 = vmatpush1.msra.mxu0 0.0
    %1173 = vmatprep.subr.mxu0 0.0
    %1174 = vmatpush1.msra.mxu0 0.0
    %1175 = vmatprep.subr.mxu0 0.0
    %1176 = vmatpush1.msra.mxu0 0.0
    %1177 = vmatprep.subr.mxu0 0.0
    %1178 = vmatpush1.msra.mxu0 0.0
    %1179 = vmatprep.subr.mxu0 0.0
    %1180 = vmatpush1.msra.mxu0 0.0
    %1181 = vmatprep.subr.mxu0 0.0
    %1182 = vmatpush1.msra.mxu0 0.0
    %1183 = vmatprep.subr.mxu0 0.0
    %1184 = vmatpush1.msra.mxu0 0.0
    %1185 = vmatprep.subr.mxu0 0.0
    %1186 = vmatpush1.msra.mxu0 0.0
    %1187 = vmatprep.subr.mxu0 0.0
    %1188 = vmatpush1.msra.mxu0 0.0
    %1189 = vmatprep.subr.mxu0 0.0
    %1190 = vmatpush1.msra.mxu0 0.0
    %1191 = vmatprep.subr.mxu0 0.0
    %1192 = vmatpush1.msra.mxu0 0.0
    %v1193 = vand.u32 %v872, 4294901760
    %1194 = vmatprep.subr.mxu0 %v1193
    %v1195 = vand.u32 %v871, 4294901760
    %1196 = vmatpush1.msra.mxu0 %v1195
    %v1197 = vand.u32 %v870, 4294901760
    %1198 = vmatprep.subr.mxu0 %v1197
    %v1199 = vand.u32 %v869, 4294901760
    %1200 = vmatpush1.msra.mxu0 %v1199
    %v1201 = vand.u32 %v868, 4294901760
    %1202 = vmatprep.subr.mxu0 %v1201
    %v1203 = vand.u32 %v867, 4294901760
    %1204 = vmatpush1.msra.mxu0 %v1203
    %v1205 = vand.u32 %v866, 4294901760
    %1206 = vmatprep.subr.mxu0 %v1205
    %v1207 = vand.u32 %v865, 4294901760
    %1208 = vmatpush1.msra.mxu0 %v1207
    %1209 = vmatprep.subr.mxu0 0.0
    %1210 = vmatpush2.msra.mxu0 0.0
    %1211 = vmatprep.subr.mxu0 0.0
    %1212 = vmatpush2.msra.mxu0 0.0
    %1213 = vmatprep.subr.mxu0 0.0
    %1214 = vmatpush2.msra.mxu0 0.0
    %1215 = vmatprep.subr.mxu0 0.0
    %1216 = vmatpush2.msra.mxu0 0.0
    %1217 = vmatprep.subr.mxu0 0.0
    %1218 = vmatpush2.msra.mxu0 0.0
    %1219 = vmatprep.subr.mxu0 0.0
    %1220 = vmatpush2.msra.mxu0 0.0
    %1221 = vmatprep.subr.mxu0 0.0
    %1222 = vmatpush2.msra.mxu0 0.0
    %1223 = vmatprep.subr.mxu0 0.0
    %1224 = vmatpush2.msra.mxu0 0.0
    %1225 = vmatprep.subr.mxu0 0.0
    %1226 = vmatpush2.msra.mxu0 0.0
    %1227 = vmatprep.subr.mxu0 0.0
    %1228 = vmatpush2.msra.mxu0 0.0
    %1229 = vmatprep.subr.mxu0 0.0
    %1230 = vmatpush2.msra.mxu0 0.0
    %1231 = vmatprep.subr.mxu0 0.0
    %1232 = vmatpush2.msra.mxu0 0.0
    %1233 = vmatprep.subr.mxu0 0.0
    %1234 = vmatpush2.msra.mxu0 0.0
    %1235 = vmatprep.subr.mxu0 0.0
    %1236 = vmatpush2.msra.mxu0 0.0
    %1237 = vmatprep.subr.mxu0 0.0
    %1238 = vmatpush2.msra.mxu0 0.0
    %1239 = vmatprep.subr.mxu0 0.0
    %1240 = vmatpush2.msra.mxu0 0.0
    %1241 = vmatprep.mubr.f32.mxu0 0.0
    %v1242 = vand.u32 %v882, 4294901760
    %v1243 = vsub.f32 %v882, %v1242
    %v1244 = vand.u32 %v1243, 4294901760
    %1245 = vmatmul.mubr.f32.gmra.mxu0 %v1244
    %v1246 = vpop.f32.mrf.mxu0
    %v1247 = vadd.f32 %v1165, %v1246
    %v1248 = vpop.f32.mrf.mxu0
    %v1249 = vadd.f32 %v1167, %v1248
    %1250 = vdwg.mxu0
    %1251 = vmatprep.subr.mxu0 0.0
    %1252 = vmatpush1.msra.mxu0 0.0
    %1253 = vmatprep.subr.mxu0 0.0
    %1254 = vmatpush1.msra.mxu0 0.0
    %1255 = vmatprep.subr.mxu0 0.0
    %1256 = vmatpush1.msra.mxu0 0.0
    %1257 = vmatprep.subr.mxu0 0.0
    %1258 = vmatpush1.msra.mxu0 0.0
    %1259 = vmatprep.subr.mxu0 0.0
    %1260 = vmatpush1.msra.mxu0 0.0
    %1261 = vmatprep.subr.mxu0 0.0
    %1262 = vmatpush1.msra.mxu0 0.0
    %1263 = vmatprep.subr.mxu0 0.0
    %1264 = vmatpush1.msra.mxu0 0.0
    %1265 = vmatprep.subr.mxu0 0.0
    %1266 = vmatpush1.msra.mxu0 0.0
    %1267 = vmatprep.subr.mxu0 0.0
    %1268 = vmatpush1.msra.mxu0 0.0
    %1269 = vmatprep.subr.mxu0 0.0
    %1270 = vmatpush1.msra.mxu0 0.0
    %1271 = vmatprep.subr.mxu0 0.0
    %1272 = vmatpush1.msra.mxu0 0.0
    %1273 = vmatprep.subr.mxu0 0.0
    %1274 = vmatpush1.msra.mxu0 0.0
    %v1275 = vand.u32 %v872, 4294901760
    %v1276 = vsub.f32 %v872, %v1275
    %v1277 = vand.u32 %v1276, 4294901760
    %1278 = vmatprep.subr.mxu0 %v1277
    %v1279 = vand.u32 %v871, 4294901760
    %v1280 = vsub.f32 %v871, %v1279
    %v1281 = vand.u32 %v1280, 4294901760
    %1282 = vmatpush1.msra.mxu0 %v1281
    %v1283 = vand.u32 %v870, 4294901760
    %v1284 = vsub.f32 %v870, %v1283
    %v1285 = vand.u32 %v1284, 4294901760
    %1286 = vmatprep.subr.mxu0 %v1285
    %v1287 = vand.u32 %v869, 4294901760
    %v1288 = vsub.f32 %v869, %v1287
    %v1289 = vand.u32 %v1288, 4294901760
    %1290 = vmatpush1.msra.mxu0 %v1289
    %v1291 = vand.u32 %v868, 4294901760
    %v1292 = vsub.f32 %v868, %v1291
    %v1293 = vand.u32 %v1292, 4294901760
    %1294 = vmatprep.subr.mxu0 %v1293
    %v1295 = vand.u32 %v867, 4294901760
    %v1296 = vsub.f32 %v867, %v1295
    %v1297 = vand.u32 %v1296, 4294901760
    %1298 = vmatpush1.msra.mxu0 %v1297
    %v1299 = vand.u32 %v866, 4294901760
    %v1300 = vsub.f32 %v866, %v1299
    %v1301 = vand.u32 %v1300, 4294901760
    %1302 = vmatprep.subr.mxu0 %v1301
    %v1303 = vand.u32 %v865, 4294901760
    %v1304 = vsub.f32 %v865, %v1303
    %v1305 = vand.u32 %v1304, 4294901760
    %1306 = vmatpush1.msra.mxu0 %v1305
    %1307 = vmatprep.subr.mxu0 0.0
    %1308 = vmatpush2.msra.mxu0 0.0
    %1309 = vmatprep.subr.mxu0 0.0
    %1310 = vmatpush2.msra.mxu0 0.0
    %1311 = vmatprep.subr.mxu0 0.0
    %1312 = vmatpush2.msra.mxu0 0.0
    %1313 = vmatprep.subr.mxu0 0.0
    %1314 = vmatpush2.msra.mxu0 0.0
    %1315 = vmatprep.subr.mxu0 0.0
    %1316 = vmatpush2.msra.mxu0 0.0
    %1317 = vmatprep.subr.mxu0 0.0
    %1318 = vmatpush2.msra.mxu0 0.0
    %1319 = vmatprep.subr.mxu0 0.0
    %1320 = vmatpush2.msra.mxu0 0.0
    %1321 = vmatprep.subr.mxu0 0.0
    %1322 = vmatpush2.msra.mxu0 0.0
    %1323 = vmatprep.subr.mxu0 0.0
    %1324 = vmatpush2.msra.mxu0 0.0
    %1325 = vmatprep.subr.mxu0 0.0
    %1326 = vmatpush2.msra.mxu0 0.0
    %1327 = vmatprep.subr.mxu0 0.0
    %1328 = vmatpush2.msra.mxu0 0.0
    %1329 = vmatprep.subr.mxu0 0.0
    %1330 = vmatpush2.msra.mxu0 0.0
    %1331 = vmatprep.subr.mxu0 0.0
    %1332 = vmatpush2.msra.mxu0 0.0
    %1333 = vmatprep.subr.mxu0 0.0
    %1334 = vmatpush2.msra.mxu0 0.0
    %1335 = vmatprep.subr.mxu0 0.0
    %1336 = vmatpush2.msra.mxu0 0.0
    %1337 = vmatprep.subr.mxu0 0.0
    %1338 = vmatpush2.msra.mxu0 0.0
    %1339 = vmatprep.mubr.f32.mxu0 0.0
    %v1340 = vand.u32 %v882, 4294901760
    %1341 = vmatmul.mubr.f32.gmra.mxu0 %v1340
    %v1342 = vpop.f32.mrf.mxu0
    %v1343 = vadd.f32 %v1247, %v1342
    %v1344 = vpop.f32.mrf.mxu0
    %v1345 = vadd.f32 %v1249, %v1344
    %1346 = vdwg.mxu0
    %1347 = vmatprep.subr.mxu0 0.0
    %1348 = vmatpush1.msra.mxu0 0.0
    %1349 = vmatprep.subr.mxu0 0.0
    %1350 = vmatpush1.msra.mxu0 0.0
    %1351 = vmatprep.subr.mxu0 0.0
    %1352 = vmatpush1.msra.mxu0 0.0
    %1353 = vmatprep.subr.mxu0 0.0
    %1354 = vmatpush1.msra.mxu0 0.0
    %1355 = vmatprep.subr.mxu0 0.0
    %1356 = vmatpush1.msra.mxu0 0.0
    %1357 = vmatprep.subr.mxu0 0.0
    %1358 = vmatpush1.msra.mxu0 0.0
    %1359 = vmatprep.subr.mxu0 0.0
    %1360 = vmatpush1.msra.mxu0 0.0
    %1361 = vmatprep.subr.mxu0 0.0
    %1362 = vmatpush1.msra.mxu0 0.0
    %1363 = vmatprep.subr.mxu0 0.0
    %1364 = vmatpush1.msra.mxu0 0.0
    %1365 = vmatprep.subr.mxu0 0.0
    %1366 = vmatpush1.msra.mxu0 0.0
    %1367 = vmatprep.subr.mxu0 0.0
    %1368 = vmatpush1.msra.mxu0 0.0
    %1369 = vmatprep.subr.mxu0 0.0
    %1370 = vmatpush1.msra.mxu0 0.0
    %v1371 = vand.u32 %v872, 4294901760
    %1372 = vmatprep.subr.mxu0 %v1371
    %v1373 = vand.u32 %v871, 4294901760
    %1374 = vmatpush1.msra.mxu0 %v1373
    %v1375 = vand.u32 %v870, 4294901760
    %1376 = vmatprep.subr.mxu0 %v1375
    %v1377 = vand.u32 %v869, 4294901760
    %1378 = vmatpush1.msra.mxu0 %v1377
    %v1379 = vand.u32 %v868, 4294901760
    %1380 = vmatprep.subr.mxu0 %v1379
    %v1381 = vand.u32 %v867, 4294901760
    %1382 = vmatpush1.msra.mxu0 %v1381
    %v1383 = vand.u32 %v866, 4294901760
    %1384 = vmatprep.subr.mxu0 %v1383
    %v1385 = vand.u32 %v865, 4294901760
    %1386 = vmatpush1.msra.mxu0 %v1385
    %1387 = vmatprep.subr.mxu0 0.0
    %1388 = vmatpush2.msra.mxu0 0.0
    %1389 = vmatprep.subr.mxu0 0.0
    %1390 = vmatpush2.msra.mxu0 0.0
    %1391 = vmatprep.subr.mxu0 0.0
    %1392 = vmatpush2.msra.mxu0 0.0
    %1393 = vmatprep.subr.mxu0 0.0
    %1394 = vmatpush2.msra.mxu0 0.0
    %1395 = vmatprep.subr.mxu0 0.0
    %1396 = vmatpush2.msra.mxu0 0.0
    %1397 = vmatprep.subr.mxu0 0.0
    %1398 = vmatpush2.msra.mxu0 0.0
    %1399 = vmatprep.subr.mxu0 0.0
    %1400 = vmatpush2.msra.mxu0 0.0
    %1401 = vmatprep.subr.mxu0 0.0
    %1402 = vmatpush2.msra.mxu0 0.0
    %1403 = vmatprep.subr.mxu0 0.0
    %1404 = vmatpush2.msra.mxu0 0.0
    %1405 = vmatprep.subr.mxu0 0.0
    %1406 = vmatpush2.msra.mxu0 0.0
    %1407 = vmatprep.subr.mxu0 0.0
    %1408 = vmatpush2.msra.mxu0 0.0
    %1409 = vmatprep.subr.mxu0 0.0
    %1410 = vmatpush2.msra.mxu0 0.0
    %1411 = vmatprep.subr.mxu0 0.0
    %1412 = vmatpush2.msra.mxu0 0.0
    %1413 = vmatprep.subr.mxu0 0.0
    %1414 = vmatpush2.msra.mxu0 0.0
    %1415 = vmatprep.subr.mxu0 0.0
    %1416 = vmatpush2.msra.mxu0 0.0
    %1417 = vmatprep.subr.mxu0 0.0
    %1418 = vmatpush2.msra.mxu0 0.0
    %1419 = vmatprep.mubr.f32.mxu0 0.0
    %v1420 = vand.u32 %v882, 4294901760
    %1421 = vmatmul.mubr.f32.gmra.mxu0 %v1420
    %v1422 = vpop.f32.mrf.mxu0
    %v1423 = vadd.f32 %v1343, %v1422
    %v1424 = vpop.f32.mrf.mxu0
    %v1425 = vadd.f32 %v1345, %v1424
    %1426 = vdwg.mxu0
    %v1429 = vcombine.low %v1423, %v1425
    %v1431 = vunpack.c.l.s4 1966171168
    %v1432 = vunpack.c.0.s8 %v1431
    %v1433 = vlaneseq
    %v1434 = vshrl.u32 %v1433, 7
    %v1435 = vsub.s32 %v1432, %v1434
    %v1436 = vrot.slane %v1429, %v1435
    %v1438 = vunpack.c.l.s4 1966171168
    %v1439 = vunpack.c.0.s8 %v1438
    %v1440 = vlaneseq
    %v1441 = vshrl.u32 %v1440, 7
    %v1442 = vsub.s32 %v1439, %v1441
    %v1443 = vrot.slane %v1436, %v1442
    %v1445 = vlaneseq
    %vm1446 = vcmp.ge.s32.totalorder %v1445, 0
    %vm1447 = vcmp.lt.s32.totalorder %v1445, 256
    %vm1448 = vmand %vm1446, %vm1447
    %1449 = vst.msk [vmem:[#allocation2] sm:$0x3] %vm1448, %v1443
    // Predicated region
    $region14: #{_moon_forward_impl.1} parent=1 // pred_check
      _
    $region15: #{_moon_forward_impl.1} parent=1 // pred_check_branch
      %1451 = sbr.rel (0) target = $region17
    $region16: #{_moon_forward_impl.1} parent=1 // pred_region
      %s1453 = ssub.s32 32, 32
      %1454 = vsyncadd [#allocation3], %s1453
      %s1456 = sshll.u32 [#allocation2], 4
      %s1457 = int_to_ptr.vmem [resolvable:$true] %s1456
      %1459 = dma.vmem_to_hbm [thread:$0]  %s1457, 32, %s3, [#allocation3]
    $region17: #{_moon_forward_impl.1} parent=1 // pred_fallthru
      _
    // Predicated region
    $region18: #{_moon_forward_impl.1} parent=1 // pred_check
      _
    $region19: #{_moon_forward_impl.1} parent=1 // pred_check_branch
      %1461 = sbr.rel (0) target = $region21
    $region20: #{_moon_forward_impl.1} parent=1 // pred_region
      %1462 = dma.done [#allocation3], 32
    $region21: #{_moon_forward_impl.1} parent=1 // pred_fallthru
      _
    %1463 = vsyncpa [#allocation3], 1

</llo_original>
